<compile_context>
chip_gen: v5e
topology: v5e:2x2
jax: 0.10.0
libtpu: 0.0.40
codegen_flags: <defaults>
</compile_context>

<pallas_src>
import functools

import jax
import jax.numpy as jnp
from jax.experimental import pallas as pl
from jax.experimental.pallas import tpu as pltpu

LANE = 128
_VMEM_LIMIT = 32 * 1024 * 1024      # >= scoped default everywhere, safe on v7x
_MAX_FUSED = 8                      # max slabs fused per weighted-sum pass
_WSUM_TILE_ROWS = 1024              # 512 KiB/buffer cap for the N-input op

_SMEM_SPEC = pl.BlockSpec(memory_space=pltpu.MemorySpace.SMEM)


def _device_kind():
    try:
        return jax.devices()[0].device_kind.lower()
    except Exception:
        return ""


_KIND = _device_kind()
# Chips exposing 2 TensorCores per JAX device (megacore): v4, v7x.
_NUM_TC = 2 if ("v4" in _KIND or "7x" in _KIND or " v7" in _KIND) else 1
# Bigger streaming tiles on v7x where 3.2 TB/s makes per-step overhead visible.
_MAX_TILE_ROWS = 4096 if _NUM_TC == 2 else 2048


# ---------------------------------------------------------------------------
# Tiling helpers
# ---------------------------------------------------------------------------
def _pick_tile_rows(rows, max_rows, groups=1):
    """Largest multiple-of-8 tile t <= max_rows with rows % (t * groups) == 0.

    Returns 0 if no such tile exists (only possible for groups > 1)."""
    t = min(max_rows, rows // groups)
    t -= t % 8
    while t >= 8:
        if rows % (t * groups) == 0:
            return t
        t -= 8
    return 0


def _maybe_buffered_spec(shape, index_map, n_steps):
    """Blocked input spec; 3-deep pipelining when the grid is long enough."""
    if n_steps >= 3 and hasattr(pl, "Buffered"):
        try:
            return pl.BlockSpec(shape, index_map, pipeline_mode=pl.Buffered(3))
        except TypeError:      # older BlockSpec without pipeline_mode
            pass
    return pl.BlockSpec(shape, index_map)


def _fold_to_acc(x):
    """(tile_rows, LANE) -> (8, LANE) via tile-aligned reshape + VPU adds."""
    r, l = x.shape
    return x.reshape(r // 8, 8, l).sum(axis=0)


# ---------------------------------------------------------------------------
# Kernels
# ---------------------------------------------------------------------------
def _make_reduce_kernel(combine, reduce_axis, scalar_out):
    """Streaming sum-reduction of combine(*inputs) over the slab.

    scalar_out=True  : finish in-kernel, write a (1,1) SMEM scalar.
    scalar_out=False : write the per-split (8,128) partial tile (v7x path)."""
    def kern(*refs):
        ins = refs[:-2]
        o_ref = refs[-2]
        acc_ref = refs[-1]
        i = pl.program_id(reduce_axis)

        @pl.when(i == 0)
        def _():
            acc_ref[...] = jnp.zeros_like(acc_ref)

        acc_ref[...] += _fold_to_acc(combine(*[r[...] for r in ins]))

        @pl.when(i == pl.num_programs(reduce_axis) - 1)
        def _():
            if scalar_out:
                o_ref[0, 0] = jnp.sum(acc_ref[...])
            else:
                o_ref[...] = acc_ref[...]

    return kern


def _axpby_kernel(ab_ref, a_ref, b_ref, o_ref):
    """out = ab[0]*a + ab[1]*b   (covers __add__ / __sub__)."""
    o_ref[...] = ab_ref[0] * a_ref[...] + ab_ref[1] * b_ref[...]


def _scale_kernel(s_ref, a_ref, o_ref):
    """out = s * a   (__mul__ with a scalar; single HBM read)."""
    o_ref[...] = s_ref[0] * a_ref[...]


def _make_weighted_sum_kernel(n_models):
    """out = sum_k w[k] * x_k ; one fused pass for model_average/model_sum."""
    def kern(*refs):
        w_ref = refs[0]
        o_ref = refs[-1]
        xs = refs[1:-1]
        acc = w_ref[0] * xs[0][...]
        for k in range(1, n_models):
            acc = acc + w_ref[k] * xs[k][...]
        o_ref[...] = acc
    return kern


# ---------------------------------------------------------------------------
# pallas_call wrappers
# ---------------------------------------------------------------------------
def _reduce_call(combine, slabs):
    R, L = slabs[0].shape
    assert L == LANE and R % 8 == 0
    for s in slabs[1:]:
        assert s.shape == (R, L), "all model slabs must share the padded shape"

    tile1 = _pick_tile_rows(R, _MAX_TILE_ROWS, 1)
    tile2 = _pick_tile_rows(R, _MAX_TILE_ROWS, 2) if _NUM_TC == 2 else 0

    if tile2 and 2 * tile2 >= tile1:
        # 2-TensorCore chips: each core reduces half the slab ("parallel"),
        # partial (8,128) tiles summed by one tiny fused op under jit.
        n_inner = R // (2 * tile2)
        in_specs = [_maybe_buffered_spec(
            (tile2, LANE), lambda c, i: (c * n_inner + i, 0), n_inner)
            for _ in slabs]
        partials = pl.pallas_call(
            _make_reduce_kernel(combine, reduce_axis=1, scalar_out=False),
            out_shape=jax.ShapeDtypeStruct((2 * 8, LANE), jnp.float32),
            grid=(2, n_inner),
            in_specs=in_specs,
            out_specs=pl.BlockSpec((8, LANE), lambda c, i: (c, 0)),
            scratch_shapes=[pltpu.VMEM((8, LANE), jnp.float32)],
            compiler_params=pltpu.CompilerParams(
                dimension_semantics=("parallel", "arbitrary"),
                vmem_limit_bytes=_VMEM_LIMIT),
        )(*slabs)
        return jnp.sum(partials)

    # Single-TensorCore chips: finish the reduction in-kernel -> SMEM scalar.
    tile = tile1
    n_blocks = R // tile
    in_specs = [_maybe_buffered_spec((tile, LANE), lambda i: (i, 0), n_blocks)
                for _ in slabs]
    out = pl.pallas_call(
        _make_reduce_kernel(combine, reduce_axis=0, scalar_out=True),
        out_shape=jax.ShapeDtypeStruct((1, 1), jnp.float32),
        grid=(n_blocks,),
        in_specs=in_specs,
        out_specs=pl.BlockSpec(memory_space=pltpu.MemorySpace.SMEM),
        scratch_shapes=[pltpu.VMEM((8, LANE), jnp.float32)],
        compiler_params=pltpu.CompilerParams(
            dimension_semantics=("arbitrary",),
            vmem_limit_bytes=_VMEM_LIMIT),
    )(*slabs)
    return out[0, 0]


def _elementwise_call(kernel, scalars, slabs, max_tile):
    R, L = slabs[0].shape
    assert L == LANE and R % 8 == 0
    for s in slabs[1:]:
        assert s.shape == (R, L), "all model slabs must share the padded shape"

    tile = _pick_tile_rows(R, max_tile, 1)
    n_blocks = R // tile
    blk_in = _maybe_buffered_spec((tile, LANE), lambda i: (i, 0), n_blocks)
    blk_out = pl.BlockSpec((tile, LANE), lambda i: (i, 0))
    return pl.pallas_call(
        kernel,
        out_shape=jax.ShapeDtypeStruct((R, LANE), jnp.float32),
        grid=(n_blocks,),
        in_specs=[_SMEM_SPEC] + [blk_in] * len(slabs),
        out_specs=blk_out,
        compiler_params=pltpu.CompilerParams(
            dimension_semantics=("parallel",),
            vmem_limit_bytes=_VMEM_LIMIT),
    )(scalars, *slabs)


# ---------------------------------------------------------------------------
# Jitted implementations (single dispatch per public op)
# ---------------------------------------------------------------------------
@jax.jit
def _dot_impl(a, b):
    return _reduce_call(lambda x, y: x * y, [a, b])


@functools.partial(jax.jit, static_argnames=("p",))
def _pow_sum_impl(a, p):
    if isinstance(p, int):
        combine = lambda x: x ** p          # exact integer power (x*x for p=2)
    else:
        # float p: exp(p*log(x)) — NaN for negative bases, 0 for 0, matching
        # torch.pow semantics; padding zeros contribute exactly 0.
        combine = lambda x: jnp.exp(p * jnp.log(x))
    return _reduce_call(combine, [a])


@jax.jit
def _axpby_impl(a, b, alpha, beta):
    ab = jnp.stack([jnp.asarray(alpha, jnp.float32),
                    jnp.asarray(beta, jnp.float32)])
    return _elementwise_call(_axpby_kernel, ab, [a, b], _MAX_TILE_ROWS)


@jax.jit
def _scale_impl(a, s):
    sv = jnp.asarray(s, jnp.float32).reshape((1,))
    return _elementwise_call(_scale_kernel, sv, [a], _MAX_TILE_ROWS)


@jax.jit
def _weighted_sum_impl(slabs, weights):
    """slabs: tuple of (R,128) arrays; weights: (N,) f32.  Fused passes of at
    most _MAX_FUSED inputs; the running partial re-enters with weight 1.0."""
    n = len(slabs)
    acc = None
    start = 0
    while start < n:
        chunk = list(slabs[start:start + _MAX_FUSED])
        w = weights[start:start + _MAX_FUSED]
        if acc is not None:
            chunk = [acc] + chunk
            w = jnp.concatenate([jnp.ones((1,), jnp.float32), w])
        acc = _elementwise_call(_make_weighted_sum_kernel(len(chunk)), w,
                                chunk, _WSUM_TILE_ROWS)
        start += _MAX_FUSED
    return acc


# ---------------------------------------------------------------------------
# Public ops (parameter-space semantics of the torch Model base class)
# ---------------------------------------------------------------------------
def pallas_dot(a_slab, b_slab):                 # Model.dot(other)
    return _dot_impl(a_slab, b_slab)


def pallas_l2_norm_square(a_slab):              # Model.L2_norm_square()
    return _pow_sum_impl(a_slab, p=2)


def pallas_model_norm(a_slab, p=2):             # Model._model_norm / __pow__
    pf = float(p)
    p_static = int(pf) if pf.is_integer() else pf
    s = _pow_sum_impl(a_slab, p=p_static)
    return s ** (1.0 / pf)


def pallas_axpby(a_slab, b_slab, alpha, beta):
    return _axpby_impl(a_slab, b_slab, alpha, beta)


def pallas_model_add(a_slab, b_slab):           # Model.__add__
    return _axpby_impl(a_slab, b_slab, 1.0, 1.0)


def pallas_model_sub(a_slab, b_slab):           # Model.__sub__
    return _axpby_impl(a_slab, b_slab, 1.0, -1.0)


def pallas_model_scale(a_slab, scalar):         # Model.__mul__(scalar)
    return _scale_impl(a_slab, scalar)


def pallas_weighted_sum(slabs, weights):
    return _weighted_sum_impl(tuple(slabs), jnp.asarray(weights, jnp.float32))


def pallas_model_average(slabs, weights=None):  # Model.model_average
    if weights is None:
        weights = [1.0 / len(slabs)] * len(slabs)
    return pallas_weighted_sum(slabs, weights)


def pallas_model_sum(slabs):                    # Model.model_sum
    return pallas_weighted_sum(slabs, [1.0] * len(slabs))


# ---------------------------------------------------------------------------
# Flatten / unflatten glue (span_model_params_to_vec / Loc_reshape_list)
# ---------------------------------------------------------------------------
def _pad_rows(rows):
    """Tiered padding: small slabs pad to 8 rows, bigger ones to 64/256 so a
    reasonably large divisor-tile always exists without streaming megabytes
    of zero padding for tiny models."""
    if rows <= 64:
        gran = 8
    elif rows <= 1024:
        gran = 64
    else:
        gran = 256
    return ((rows + gran - 1) // gran) * gran


def params_to_slab(params):
    vec = jnp.concatenate([jnp.asarray(p, jnp.float32).reshape(-1)
                           for p in params])
    n = int(vec.shape[0])
    rows = _pad_rows(max(1, -(-n // LANE)))
    padded = rows * LANE
    vec = jnp.pad(vec, (0, padded - n))
    return vec.reshape(rows, LANE), n


def slab_to_params(slab, shapes, n):
    vec = slab.reshape(-1)[:n]
    out, idx = [], 0
    for s in shapes:
        sz = 1
        for d in s:
            sz *= d
        out.append(vec[idx:idx + sz].reshape(s))
        idx += sz
    return out


# ---------------------------------------------------------------------------
# Demo
# ---------------------------------------------------------------------------
if __name__ == "__main__":
    # Small synthetic "model": conv weight/bias + fc weight/bias.
    shapes = [(4, 4, 3, 3), (4,), (32, 64), (32,)]
    key = jax.random.PRNGKey(0)
    keys = jax.random.split(key, 2 * len(shapes) + 2)
    params_a = [jax.random.normal(keys[i], s, jnp.float32)
                for i, s in enumerate(shapes)]
    params_b = [jax.random.normal(keys[len(shapes) + i], s, jnp.float32)
                for i, s in enumerate(shapes)]

    slab_a, n = params_to_slab(params_a)
    slab_b, _ = params_to_slab(params_b)

    dot_ab = pallas_dot(slab_a, slab_b)
    l2sq_a = pallas_l2_norm_square(slab_a)
    norm_a = pallas_model_norm(slab_a, p=2)
    sum_ab = pallas_model_add(slab_a, slab_b)
    diff_ab = pallas_model_sub(slab_a, slab_b)
    half_a = pallas_model_scale(slab_a, 0.5)
    avg_ab = pallas_model_average([slab_a, slab_b], weights=[0.3, 0.7])
    tot_ab = pallas_model_sum([slab_a, slab_b])

    # Larger synthetic model: exercises multi-block grids, the Buffered(3)
    # pipeline, and (on 2-TC chips) the split reduction path.
    big_shapes = [(1024, 1024), (1024,)]
    big_a = [jax.random.normal(keys[-2], s, jnp.float32) for s in big_shapes]
    big_b = [jax.random.normal(keys[-1], s, jnp.float32) for s in big_shapes]
    bslab_a, bn = params_to_slab(big_a)
    bslab_b, _ = params_to_slab(big_b)
    bdot = pallas_dot(bslab_a, bslab_b)
    bl2 = pallas_l2_norm_square(bslab_a)
    bscaled = pallas_model_scale(bslab_a, -2.0)

    jax.block_until_ready((dot_ab, l2sq_a, norm_a, sum_ab, diff_ab, half_a,
                           avg_ab, tot_ab, bdot, bl2, bscaled))

    # Reference checks (plain JAX) -- same semantics as the torch code.
    vec_a = slab_a.reshape(-1)[:n]
    vec_b = slab_b.reshape(-1)[:n]
    assert jnp.allclose(dot_ab, jnp.sum(vec_a * vec_b), rtol=1e-5, atol=1e-3)
    assert jnp.allclose(l2sq_a, jnp.sum(vec_a ** 2), rtol=1e-5, atol=1e-3)
    assert jnp.allclose(norm_a, jnp.sqrt(jnp.sum(vec_a ** 2)),
                        rtol=1e-5, atol=1e-3)
    assert jnp.allclose(sum_ab.reshape(-1)[:n], vec_a + vec_b, atol=1e-6)
    assert jnp.allclose(diff_ab.reshape(-1)[:n], vec_a - vec_b, atol=1e-6)
    assert jnp.allclose(half_a.reshape(-1)[:n], 0.5 * vec_a, atol=1e-6)
    assert jnp.allclose(avg_ab.reshape(-1)[:n], 0.3 * vec_a + 0.7 * vec_b,
                        atol=1e-5)
    assert jnp.allclose(tot_ab.reshape(-1)[:n], vec_a + vec_b, atol=1e-6)

    bvec_a = bslab_a.reshape(-1)[:bn]
    bvec_b = bslab_b.reshape(-1)[:bn]
    assert jnp.allclose(bdot, jnp.sum(bvec_a * bvec_b), rtol=1e-3, atol=2.0)
    assert jnp.allclose(bl2, jnp.sum(bvec_a ** 2), rtol=1e-3, atol=2.0)
    assert jnp.allclose(bscaled.reshape(-1)[:bn], -2.0 * bvec_a, atol=1e-5)

    # Round-trip a result back into per-parameter tensors (Loc_reshape_list).
    _ = slab_to_params(sum_ab, shapes, n)

    print("KERNEL_OK")
</pallas_src>

<mosaic_0001>
module attributes {stable_mosaic.version = 11 : i64} {
  func.func @kern(%arg0: i32, %arg1: memref<24x128xf32, #tpu.memory_space<vmem>>, %arg2: memref<24x128xf32, #tpu.memory_space<vmem>>, %arg3: memref<1x1xf32, #tpu.memory_space<smem>>, %arg4: memref<8x128xf32, #tpu.memory_space<vmem>>) attributes {dimension_semantics = [#tpu.dimension_semantics<arbitrary>], iteration_bounds = array<i64: 1>, scalar_prefetch = 0 : i64, scratch_operands = 1 : i64, tpu.core_type = #tpu.core_type<tc>, window_params = [{transform_indices = @transform_0, window_bounds = array<i64: 24, 128>}, {transform_indices = @transform_1, window_bounds = array<i64: 24, 128>}, {transform_indices = @transform_2, window_bounds = array<i64: 1, 1>}]} {
    %c0_i32 = arith.constant 0 : i32
    %0 = arith.cmpi eq, %arg0, %c0_i32 : i32
    %1 = arith.extui %0 : i1 to i32
    %c0_i32_0 = arith.constant 0 : i32
    %2 = arith.cmpi ne, %1, %c0_i32_0 : i32
    scf.if %2 {
      %cst_10 = arith.constant 0.000000e+00 : f32
      %14 = vector.broadcast %cst_10 : f32 to vector<8x128xf32>
      %c0_11 = arith.constant 0 : index
      %c0_12 = arith.constant 0 : index
      %15 = vector.load %arg4[%c0_11, %c0_12] : memref<8x128xf32, #tpu.memory_space<vmem>>, vector<8x128xf32>
      tpu.vector_store %arg4[%c0_11, %c0_12], %14 {strides = array<i32>} : memref<8x128xf32, #tpu.memory_space<vmem>>, vector<8x128xf32>,
    } else {
    }
    %c0 = arith.constant 0 : index
    %c0_1 = arith.constant 0 : index
    %3 = vector.load %arg4[%c0, %c0_1] : memref<8x128xf32, #tpu.memory_space<vmem>>, vector<8x128xf32>
    %c0_2 = arith.constant 0 : index
    %c0_3 = arith.constant 0 : index
    %4 = vector.load %arg1[%c0_2, %c0_3] : memref<24x128xf32, #tpu.memory_space<vmem>>, vector<24x128xf32>
    %c0_4 = arith.constant 0 : index
    %c0_5 = arith.constant 0 : index
    %5 = vector.load %arg2[%c0_4, %c0_5] : memref<24x128xf32, #tpu.memory_space<vmem>>, vector<24x128xf32>
    %6 = arith.mulf %4, %5 : vector<24x128xf32>
    %7 = vector.shape_cast %6 : vector<24x128xf32> to vector<3x8x128xf32>
    %cst = arith.constant dense<0.000000e+00> : vector<8x128xf32>
    %8 = vector.multi_reduction <add>, %7, %cst [0] : vector<3x8x128xf32> to vector<8x128xf32>
    %9 = arith.addf %3, %8 : vector<8x128xf32>
    %c0_6 = arith.constant 0 : index
    %c0_7 = arith.constant 0 : index
    %10 = vector.load %arg4[%c0_6, %c0_7] : memref<8x128xf32, #tpu.memory_space<vmem>>, vector<8x128xf32>
    tpu.vector_store %arg4[%c0_6, %c0_7], %9 {strides = array<i32>} : memref<8x128xf32, #tpu.memory_space<vmem>>, vector<8x128xf32>,
    %c0_i32_8 = arith.constant 0 : i32
    %11 = arith.cmpi eq, %arg0, %c0_i32_8 : i32
    %12 = arith.extui %11 : i1 to i32
    %c0_i32_9 = arith.constant 0 : i32
    %13 = arith.cmpi ne, %12, %c0_i32_9 : i32
    scf.if %13 {
      %c0_10 = arith.constant 0 : index
      %c0_11 = arith.constant 0 : index
      %14 = vector.load %arg4[%c0_10, %c0_11] : memref<8x128xf32, #tpu.memory_space<vmem>>, vector<8x128xf32>
      %15 = vector.shape_cast %14 : vector<8x128xf32> to vector<1x8x128xf32>
      %cst_12 = arith.constant dense<0.000000e+00> : vector<1xf32>
      %16 = vector.multi_reduction <add>, %15, %cst_12 [1, 2] : vector<1x8x128xf32> to vector<1xf32>
      %17 = vector.shape_cast %16 : vector<1xf32> to vector<1x1x1xf32>
      %18 = vector.extract %17[0, 0, 0] : f32 from vector<1x1x1xf32>
      %c0_13 = arith.constant 0 : index
      %c0_14 = arith.constant 0 : index
      %19 = memref.load %arg3[%c0_13, %c0_14] : memref<1x1xf32, #tpu.memory_space<smem>>
      memref.store %18, %arg3[%c0_13, %c0_14] : memref<1x1xf32, #tpu.memory_space<smem>>
    } else {
    }
    return
  }
  func.func @transform_0(%arg0: i32) -> (i32, i32) {
    %c0_i32 = arith.constant 0 : i32
    %c0_i32_0 = arith.constant 0 : i32
    return %arg0, %c0_i32 : i32, i32
  }
  func.func @transform_1(%arg0: i32) -> (i32, i32) {
    %c0_i32 = arith.constant 0 : i32
    %c0_i32_0 = arith.constant 0 : i32
    return %arg0, %c0_i32 : i32, i32
  }
  func.func @transform_2(%arg0: i32) -> (i32, i32) {
    %c0_i32 = arith.constant 0 : i32
    %c0_i32_0 = arith.constant 0 : i32
    %c0_i32_1 = arith.constant 0 : i32
    return %c0_i32, %c0_i32_0 : i32, i32
  }
}

</mosaic_0001>

<llo_original>
// kernel: _dot_impl.1
$region0: #{_dot_impl.1}
  #allocation0 [shape = 'u32[]', space=smem, size = 0x4, offset = 0x4, fixed_abs, tag = 'smem constant byte address 0x4 - core index']
  #allocation1 [shape = 'u32[72,128]{1,0:T(1,128)}', space=vmem, size = 0x9000, scoped, tag = 'internal scratch']
  #allocation2 [shape = 'f32[8,128]{1,0:T(8,128)}', space=vmem, size = 0x1000, scoped, tag = 'scratch operand']
  %s0 = inlined_call_operand.hbm [shape: f32[24,128], index: 0, kind: input, shape index: {}]
  %s1 = inlined_call_operand.hbm [shape: f32[24,128], index: 1, kind: input, shape index: {}]
  %s2 = inlined_call_operand.hbm [shape: f32[1,1], index: 2, kind: output, shape index: {}]
  %s3 = sld [smem:[#allocation0]]
  $region34: #{_dot_impl.1} parent=0
    _
  %s5 = ssub.s32 1, %s3
  %s6 = scalar_select 0, %s5, %s3
  $region1: #{_dot_impl.1} parent=0
    #allocation3 [shape = 'u8[12288]{0}', space=vmem, size = 0x3000, scoped, tag = 'input window, operand 0, single buffered']
    #allocation4 [shape = 's32[1]{0}', space=sflag, size = 0x4, scoped, tag = 'scoped memory for _dot_impl.1']
    #allocation5 [shape = 's32[1]{0}', space=sflag, size = 0x4, scoped, tag = 'scoped memory for _dot_impl.1']
    #allocation6 [shape = 'u8[12288]{0}', space=vmem, size = 0x3000, scoped, tag = 'input window, operand 1, single buffered']
    #allocation7 [shape = 's32[1]{0}', space=sflag, size = 0x4, scoped, tag = 'scoped memory for _dot_impl.1']
    #allocation8 [shape = 'u8[512]{0}', space=smem, size = 0x200, scoped, tag = 'output window, operand 0, single buffered']
    %7 = vsyncpa [#allocation4], 0
    %8 = vsyncpa [#allocation7], 0
    %9 = vsyncpa [#allocation5], 0
    // Predicated region
    $region2: #{_dot_impl.1} parent=1 // pred_check
      _
    $region3: #{_dot_impl.1} parent=1 // pred_check_branch
      %11 = sbr.rel (0) target = $region5
    $region4: #{_dot_impl.1} parent=1 // pred_region
      %13 = vsyncadd [#allocation4], 0
      %s14 = sshll.u32 %s0, 4
      %s15 = int_to_ptr.hbm [resolvable:$true] %s14
      %s16 = sshll.u32 [#allocation3], 4
      %s17 = int_to_ptr.vmem [resolvable:$true] %s16
      %22 = dma.hbm_to_vmem [thread:$0]  %s15, 384, %s17, [#allocation4], 128, 128, 8
    $region5: #{_dot_impl.1} parent=1 // pred_fallthru
      _
    // Predicated region
    $region6: #{_dot_impl.1} parent=1 // pred_check
      _
    $region7: #{_dot_impl.1} parent=1 // pred_check_branch
      %24 = sbr.rel (0) target = $region9
    $region8: #{_dot_impl.1} parent=1 // pred_region
      %26 = vsyncadd [#allocation7], 0
      %s27 = sshll.u32 %s1, 4
      %s28 = int_to_ptr.hbm [resolvable:$true] %s27
      %s29 = sshll.u32 [#allocation6], 4
      %s30 = int_to_ptr.vmem [resolvable:$true] %s29
      %35 = dma.hbm_to_vmem [thread:$0]  %s28, 384, %s30, [#allocation7], 128, 128, 8
    $region9: #{_dot_impl.1} parent=1 // pred_fallthru
      _
    // Predicated region
    $region10: #{_dot_impl.1} parent=1 // pred_check
      _
    $region11: #{_dot_impl.1} parent=1 // pred_check_branch
      %37 = sbr.rel (0) target = $region13
    $region12: #{_dot_impl.1} parent=1 // pred_region
      %39 = dma.done [#allocation4], 384
    $region13: #{_dot_impl.1} parent=1 // pred_fallthru
      _
    // Predicated region
    $region14: #{_dot_impl.1} parent=1 // pred_check
      _
    $region15: #{_dot_impl.1} parent=1 // pred_check_branch
      %41 = sbr.rel (0) target = $region17
    $region16: #{_dot_impl.1} parent=1 // pred_region
      %43 = dma.done [#allocation7], 384
    $region17: #{_dot_impl.1} parent=1 // pred_fallthru
      _
    %p44 = scmp.eq.s32.totalorder 0, 0
    // Predicated region
    $region18: #{_dot_impl.1} parent=1 // pred_check
      %p45 = pneg %p44
    $region19: #{_dot_impl.1} parent=1 // pred_check_branch
      %47 = sbr.rel (%p45) target = $region21
    $region20: #{_dot_impl.1} parent=1 // pred_region
      %48 = vst [vmem:[#allocation2] sm:$0xff] 0.0
    $region21: #{_dot_impl.1} parent=1 // pred_fallthru
      _
    %v49 = vld [vmem:[#allocation2] sm:$0xff]
    %v50 = vld [vmem:[#allocation3] sm:$0xff]
    %v51 = vld [vmem:[#allocation3 + $0x8] sm:$0xff]
    %v52 = vld [vmem:[#allocation3 + $0x10] sm:$0xff]
    %v53 = vld [vmem:[#allocation6] sm:$0xff]
    %v54 = vld [vmem:[#allocation6 + $0x8] sm:$0xff]
    %v55 = vld [vmem:[#allocation6 + $0x10] sm:$0xff]
    %v56 = vmul.f32 %v50, %v53
    %v57 = vmul.f32 %v51, %v54
    %v58 = vmul.f32 %v52, %v55
    %v59 = vadd.f32 %v56, %v57
    %v60 = vadd.f32 %v59, %v58
    %v61 = vadd.f32 %v49, %v60
    %62 = vst [vmem:[#allocation2] sm:$0xff] %v61
    // Predicated region
    $region22: #{_dot_impl.1} parent=1 // pred_check
      %p63 = pneg %p44
    $region23: #{_dot_impl.1} parent=1 // pred_check_branch
      %65 = sbr.rel (%p63) target = $region25
    $region24: #{_dot_impl.1} parent=1 // pred_region
      %v66 = vld [vmem:[#allocation2] sm:$0xff]
      %67 = vadd.xlane.f32.xlu0 %v66
      %v68 = vpop.xlane.xlu0 %67
      %v69 = vrot.slane %v68, 4
      %v70 = vadd.f32 %v68, %v69
      %v71 = vrot.slane %v70, 2
      %v72 = vadd.f32 %v70, %v71
      %v73 = vrot.slane %v72, 1
      %v74 = vadd.f32 %v72, %v73
      %s75 = vtos %v74
      %s76 = scalar_lea.smem [#allocation8], 0
      %77 = sst [smem:[%s76]] %s75
    $region25: #{_dot_impl.1} parent=1 // pred_fallthru
      _
    // Predicated region
    $region26: #{_dot_impl.1} parent=1 // pred_check
      _
    $region27: #{_dot_impl.1} parent=1 // pred_check_branch
      %79 = sbr.rel (0) target = $region29
    $region28: #{_dot_impl.1} parent=1 // pred_region
      %81 = vsyncadd [#allocation5], 0
      %s83 = sshll.u32 %s2, 4
      %s84 = int_to_ptr.hbm [resolvable:$true] %s83
      %86 = dma.smem_to_hbm [#allocation8], 16, %s84, [#allocation5]
    $region29: #{_dot_impl.1} parent=1 // pred_fallthru
      _
    // Predicated region
    $region30: #{_dot_impl.1} parent=1 // pred_check
      _
    $region31: #{_dot_impl.1} parent=1 // pred_check_branch
      %88 = sbr.rel (0) target = $region33
    $region32: #{_dot_impl.1} parent=1 // pred_region
      %90 = dma.done [#allocation5], 16
    $region33: #{_dot_impl.1} parent=1 // pred_fallthru
      _
    %91 = sfence
    %92 = vsyncpa [#allocation4], 1
    %93 = vsyncpa [#allocation7], 1
    %94 = vsyncpa [#allocation5], 1

</llo_original>
